<compile_context>
chip_gen: v7x
topology: tpu7x:2x2x1
jax: 0.10.0
libtpu: 0.0.40
codegen_flags: <defaults>
</compile_context>

<pallas_src>
import functools
import math

import jax
import jax.numpy as jnp
from jax.experimental import pallas as pl
from jax.experimental.pallas import tpu as pltpu


# ----------------------------------------------------------------------------
# Pallas kernel: entire FLNSH ensemble forward = 2 matmuls + relu + softmax.
# ----------------------------------------------------------------------------
def _flnsh_kernel(x_ref, w0_ref, b0_ref, w1_ref, bias_ref, o_ref):
    # First MXU push: block-diagonal local layers + replicated shared layer.
    h = jnp.maximum(
        jnp.dot(x_ref[...], w0_ref[...], preferred_element_type=jnp.float32)
        + b0_ref[...],
        0.0)
    # Second MXU push: stacked, activity-masked second layer -> ensemble sum,
    # plus the precomputed output-bias constant (active biases + inactive v).
    z = (jnp.dot(h, w1_ref[...], preferred_element_type=jnp.float32)
         + bias_ref[...])

    if o_ref.shape[1] == 1:                       # classes == 1 -> sigmoid
        out = jax.nn.sigmoid(z)
    else:                                         # softmax (exact divide)
        m = jnp.max(z, axis=1, keepdims=True)
        e = jnp.exp(z - m)
        out = e / jnp.sum(e, axis=1, keepdims=True)

    o_ref[...] = out.astype(o_ref.dtype)


# ----------------------------------------------------------------------------
# Jitted wrapper: layout plumbing + weight masking + one pallas_call.
# ----------------------------------------------------------------------------
@functools.partial(jax.jit, static_argnames=("cl", "max_cl", "classes"))
def _flnsh_forward(xs, mask, w0_big, b0_big, wloc1, bloc1, wsh1, bsh1, v,
                   *, cl, max_cl, classes):
    nc = len(xs)
    batch = xs[0].shape[0]
    h0 = wloc1.shape[1]
    h1 = wsh1.shape[0]

    # Split local/shared columns per client, zero-pad local cols to max_cl and
    # pack everything into ONE lane-contiguous input slab:
    #   [xloc_0 .. xloc_{nc-1} | xsh_0 .. xsh_{nc-1}]   shape (batch, in_dim)
    xloc_parts, xsh_parts = [], []
    for i in range(nc):
        x2 = jnp.reshape(xs[i], (batch, -1))
        f = cl[i]
        xl = x2[:, :f]
        if f < max_cl:
            xl = jnp.pad(xl, ((0, 0), (0, max_cl - f)))
        xloc_parts.append(xl)
        xsh_parts.append(x2[:, f:])
    x_big = jnp.concatenate(xloc_parts + xsh_parts, axis=1)

    # Second-layer weights, masked by per-client activity and vertically
    # stacked so one matmul yields  sum_i active_i * (loc1_i(loc_i) + sh1(sh_i)).
    w1_loc = (wloc1 * mask[:, None, None]).reshape(nc * h0, classes)
    w1_sh = (jnp.broadcast_to(wsh1, (nc, h1, classes))
             * mask[:, None, None]).reshape(nc * h1, classes)
    w1_big = jnp.concatenate([w1_loc, w1_sh], axis=0)

    # Output-bias constant:  sum_i [ active_i*(bloc1_i + bsh1) + (1-active_i)*v_i ]
    bias_const = jnp.sum(mask[:, None] * (bloc1 + bsh1)
                         + (1.0 - mask[:, None]) * v,
                         axis=0, keepdims=True)

    out = pl.pallas_call(
        _flnsh_kernel,
        out_shape=jax.ShapeDtypeStruct((batch, classes), jnp.float32),
        in_specs=[pl.BlockSpec(memory_space=pltpu.MemorySpace.VMEM)] * 5,
        out_specs=pl.BlockSpec(memory_space=pltpu.MemorySpace.VMEM),
    )(x_big, w0_big, b0_big, w1_big, bias_const)

    if classes == 1:
        out = jnp.squeeze(out, axis=1)            # torch.squeeze(x, dim=1)
    return out


def _linear_init(key, fan_in, fan_out):
    """torch.nn.Linear-style init: uniform(+-1/sqrt(fan_in)); W stored (in,out)."""
    kw, kb = jax.random.split(key)
    bound = 1.0 / math.sqrt(fan_in) if fan_in > 0 else 0.0
    w = jax.random.uniform(kw, (fan_in, fan_out), jnp.float32, -bound, bound)
    b = jax.random.uniform(kb, (1, fan_out), jnp.float32, -bound, bound)
    return w, b


# ----------------------------------------------------------------------------
# Parameter container mirroring FLNSH.__init__ (deterministic init via JAX PRNG)
# ----------------------------------------------------------------------------
class FLNSH:
    def __init__(self, feats, nc=4, hidden=(5, 5), classes=5, seed=1226):
        self.nc = nc
        self.classes = classes
        self.hidden = tuple(hidden)
        self.train_feat = [len(f) for f in feats]
        self.shared = [f for f in feats[0] if f in feats[1]]
        self.shl = len(self.shared)
        self.c = [[f for f in feats[i] if f not in self.shared]
                  for i in range(nc)]
        self.cl = [len(self.c[i]) for i in range(nc)]
        self.max_cl = max(self.cl)
        h0, h1 = self.hidden

        key = jax.random.PRNGKey(seed)

        # shared two-layer branch (same for all clients)
        key, k_sh0, k_sh1 = jax.random.split(key, 3)
        self.wsh0, self.bsh0 = _linear_init(k_sh0, self.shl, h1)    # (shl,h1),(1,h1)
        self.wsh1, self.bsh1 = _linear_init(k_sh1, h1, classes)     # (h1,C), (1,C)

        # per-client local two-layer branches
        wloc0, bloc0, wloc1, bloc1 = [], [], [], []
        for i in range(nc):
            key, k0, k1 = jax.random.split(key, 3)
            w0, b0 = _linear_init(k0, self.cl[i], h0)
            w1, b1 = _linear_init(k1, h0, classes)
            wloc0.append(w0); bloc0.append(b0)
            wloc1.append(w1); bloc1.append(b1)

        # Per-client copies (padded) kept for the pure-JAX reference.
        self.wloc0 = jnp.stack([
            jnp.pad(w, ((0, self.max_cl - w.shape[0]), (0, 0))) for w in wloc0
        ])                                              # (nc, max_cl, h0)
        self.bloc0 = jnp.stack(bloc0)                   # (nc, 1, h0)
        self.wloc1 = jnp.stack(wloc1)                   # (nc, h0, C)
        self.bloc1 = jnp.concatenate(bloc1, axis=0)     # (nc, C)

        self.v = jnp.zeros((nc, classes), jnp.float32)  # torch.zeros(nc, classes)
        self.S = [0.0] * nc                             # torch.zeros(nc)

        # ---- Pre-packed first-layer slabs (activity-independent) -----------
        # Input  layout: [xloc_0(pad) .. xloc_{nc-1}(pad) | xsh_0 .. xsh_{nc-1}]
        # Hidden layout: [loc_hid_0 .. loc_hid_{nc-1} | sh_hid_0 .. sh_hid_{nc-1}]
        in_dim = nc * self.max_cl + nc * self.shl
        hid_dim = nc * h0 + nc * h1
        w0_big = jnp.zeros((in_dim, hid_dim), jnp.float32)
        for i in range(nc):
            # local block (padded rows stay zero -> exact with zero-padded x)
            w0_big = w0_big.at[i * self.max_cl: i * self.max_cl + self.cl[i],
                               i * h0:(i + 1) * h0].set(wloc0[i])
            # shared block (same weights replicated per client)
            r0 = nc * self.max_cl + i * self.shl
            w0_big = w0_big.at[r0: r0 + self.shl,
                               nc * h0 + i * h1: nc * h0 + (i + 1) * h1].set(self.wsh0)
        self.w0_big = w0_big
        self.b0_big = jnp.concatenate(
            [b for b in bloc0] + [self.bsh0] * nc, axis=1)   # (1, hid_dim)

    def forward(self, x):
        if len(x) != self.nc:
            raise Exception('Invalid number of inputs.')
        # Truthiness of S[i], like torch's `if self.S[i]` (runtime input: no
        # retrace/recompile when S changes).
        mask = jnp.asarray([1.0 if bool(s) else 0.0 for s in self.S],
                           dtype=jnp.float32)
        return _flnsh_forward(
            tuple(x), mask, self.w0_big, self.b0_big,
            self.wloc1, self.bloc1, self.wsh1, self.bsh1, self.v,
            cl=tuple(self.cl), max_cl=self.max_cl, classes=self.classes)


# ----------------------------------------------------------------------------
# Pure-JAX reference (mirrors the torch forward) for correctness checking.
# ----------------------------------------------------------------------------
def _reference_forward(model, xs):
    batch = xs[0].shape[0]
    fl = []
    for i in range(model.nc):
        x2 = jnp.reshape(xs[i], (batch, -1))
        f = model.cl[i]
        if model.S[i]:
            loc = jax.nn.relu(x2[:, :f] @ model.wloc0[i, :f, :] + model.bloc0[i])
            sh = jax.nn.relu(x2[:, f:] @ model.wsh0 + model.bsh0)
            fl.append(loc @ model.wloc1[i] + model.bloc1[i]
                      + sh @ model.wsh1 + model.bsh1)
        else:
            fl.append(jnp.broadcast_to(model.v[i], (batch, model.classes)))
    z = sum(fl)
    if model.classes == 1:
        return jnp.squeeze(jax.nn.sigmoid(z), axis=1)
    return jax.nn.softmax(z, axis=1)


# ----------------------------------------------------------------------------
# main
# ----------------------------------------------------------------------------
if __name__ == "__main__":
    # 4 clients, 3 local + 3 shared features each, hidden=(5,5), classes=5
    feats = [
        [0, 1, 2, 3, 4, 5],
        [3, 4, 5, 6, 7, 8],
        [3, 4, 5, 9, 10, 11],
        [3, 4, 5, 12, 13, 14],
    ]
    nc, classes, batch = 4, 5, 8

    model = FLNSH(feats, nc=nc, hidden=(5, 5), classes=classes, seed=1226)

    key = jax.random.PRNGKey(0)
    xs = []
    for i in range(nc):
        key, sub = jax.random.split(key)
        dim = model.cl[i] + model.shl   # [local cols | shared cols]
        xs.append(jax.random.normal(sub, (batch, dim), dtype=jnp.float32))

    # Case 1: default S (all clients inactive, v == 0) -> softmax(0) is uniform.
    out0 = jax.block_until_ready(model.forward(xs))
    assert out0.shape == (batch, classes)
    assert bool(jnp.allclose(out0, 1.0 / classes, atol=1e-3))

    # Case 2: mark some clients active -> full local + shared two-layer path.
    model.S = [1.0, 0.0, 1.0, 1.0]
    out1 = jax.block_until_ready(model.forward(xs))
    ref1 = _reference_forward(model, xs)
    assert out1.shape == (batch, classes)
    # Exact divide in the kernel -> rows sum to 1 within f32 rounding.
    assert bool(jnp.allclose(jnp.sum(out1, axis=1), 1.0, atol=1e-5))
    # Tolerance accounts for MXU/XLA matmul precision differences (tiny shapes).
    assert bool(jnp.allclose(out1, ref1, rtol=1e-2, atol=1e-2))

    print("KERNEL_OK")
</pallas_src>

<mosaic_0001>
module attributes {stable_mosaic.version = 11 : i64} {
  func.func @_flnsh_kernel(%arg0: memref<8x24xf32, #tpu.memory_space<vmem>>, %arg1: memref<24x40xf32, #tpu.memory_space<vmem>>, %arg2: memref<1x40xf32, #tpu.memory_space<vmem>>, %arg3: memref<40x5xf32, #tpu.memory_space<vmem>>, %arg4: memref<1x5xf32, #tpu.memory_space<vmem>>, %arg5: memref<8x5xf32, #tpu.memory_space<vmem>>) attributes {dimension_semantics = [], scalar_prefetch = 0 : i64, scratch_operands = 0 : i64, tpu.core_type = #tpu.core_type<tc>} {
    %c0 = arith.constant 0 : index
    %c0_0 = arith.constant 0 : index
    %0 = vector.load %arg0[%c0, %c0_0] : memref<8x24xf32, #tpu.memory_space<vmem>>, vector<8x24xf32>
    %c0_1 = arith.constant 0 : index
    %c0_2 = arith.constant 0 : index
    %1 = vector.load %arg1[%c0_1, %c0_2] : memref<24x40xf32, #tpu.memory_space<vmem>>, vector<24x40xf32>
    %cst = arith.constant dense<0.000000e+00> : vector<8x40xf32>
    %2 = tpu.matmul %0, %1, %cst {dimension_numbers = #tpu.dot_dimension_numbers<[1], [0], [0], [1], [0, 0, 1, 1], [], []>} : vector<8x24xf32>, vector<24x40xf32>, vector<8x40xf32> -> vector<8x40xf32>
    %c0_3 = arith.constant 0 : index
    %c0_4 = arith.constant 0 : index
    %3 = vector.load %arg2[%c0_3, %c0_4] : memref<1x40xf32, #tpu.memory_space<vmem>>, vector<1x40xf32>
    %4 = vector.broadcast %3 : vector<1x40xf32> to vector<8x40xf32>
    %5 = arith.addf %2, %4 : vector<8x40xf32>
    %cst_5 = arith.constant 0.000000e+00 : f32
    %6 = vector.broadcast %cst_5 : f32 to vector<8x40xf32>
    %7 = arith.maximumf %5, %6 : vector<8x40xf32>
    %c0_6 = arith.constant 0 : index
    %c0_7 = arith.constant 0 : index
    %8 = vector.load %arg3[%c0_6, %c0_7] : memref<40x5xf32, #tpu.memory_space<vmem>>, vector<40x5xf32>
    %cst_8 = arith.constant dense<0.000000e+00> : vector<8x5xf32>
    %9 = tpu.matmul %7, %8, %cst_8 {dimension_numbers = #tpu.dot_dimension_numbers<[1], [0], [0], [1], [0, 0, 1, 1], [], []>} : vector<8x40xf32>, vector<40x5xf32>, vector<8x5xf32> -> vector<8x5xf32>
    %c0_9 = arith.constant 0 : index
    %c0_10 = arith.constant 0 : index
    %10 = vector.load %arg4[%c0_9, %c0_10] : memref<1x5xf32, #tpu.memory_space<vmem>>, vector<1x5xf32>
    %11 = vector.broadcast %10 : vector<1x5xf32> to vector<8x5xf32>
    %12 = arith.addf %9, %11 : vector<8x5xf32>
    %cst_11 = arith.constant dense<0xFF800000> : vector<8xf32>
    %13 = vector.multi_reduction <maximumf>, %12, %cst_11 [1] : vector<8x5xf32> to vector<8xf32>
    %14 = vector.shape_cast %13 : vector<8xf32> to vector<8x1xf32>
    %15 = vector.broadcast %14 : vector<8x1xf32> to vector<8x5xf32>
    %16 = arith.subf %12, %15 : vector<8x5xf32>
    %17 = math.exp %16 : vector<8x5xf32>
    %cst_12 = arith.constant dense<0.000000e+00> : vector<8xf32>
    %18 = vector.multi_reduction <add>, %17, %cst_12 [1] : vector<8x5xf32> to vector<8xf32>
    %19 = vector.shape_cast %18 : vector<8xf32> to vector<8x1xf32>
    %20 = vector.broadcast %19 : vector<8x1xf32> to vector<8x5xf32>
    %21 = arith.divf %17, %20 : vector<8x5xf32>
    %c0_13 = arith.constant 0 : index
    %c0_14 = arith.constant 0 : index
    %22 = vector.load %arg5[%c0_13, %c0_14] : memref<8x5xf32, #tpu.memory_space<vmem>>, vector<8x5xf32>
    tpu.vector_store %arg5[%c0_13, %c0_14], %21 {strides = array<i32>} : memref<8x5xf32, #tpu.memory_space<vmem>>, vector<8x5xf32>,
    return
  }
}

</mosaic_0001>

<llo_original>
// kernel: _flnsh_forward.1
$region0: #{_flnsh_forward.1}
  #allocation0 [shape = 'u32[]', space=smem, size = 0x4, offset = 0x4, fixed_abs, tag = 'smem constant byte address 0x4 - core index']
  #allocation1 [shape = 'u32[144,128]{1,0:T(1,128)}', space=vmem, size = 0x12000, scoped, tag = 'internal scratch']
  %s0 = inlined_call_operand.vmem [shape: f32[8,24], index: 0, kind: input, shape index: {}]
  %s1 = inlined_call_operand.vmem [shape: f32[24,40], index: 1, kind: input, shape index: {}]
  %s2 = inlined_call_operand.vmem [shape: f32[1,40], index: 2, kind: input, shape index: {}]
  %s3 = inlined_call_operand.vmem [shape: f32[40,5], index: 3, kind: input, shape index: {}]
  %s4 = inlined_call_operand.vmem [shape: f32[1,5], index: 4, kind: input, shape index: {}]
  %s5 = inlined_call_operand.hbm [shape: f32[8,5], index: 5, kind: output, shape index: {}]
  %s6 = sld [smem:[#allocation0]]
  $region30: #{_flnsh_forward.1} parent=0
    _
  %s8 = ssub.s32 1, %s6
  %s9 = scalar_select 0, %s8, %s6
  $region1: #{_flnsh_forward.1} parent=0
    #allocation2 [shape = 'u8[4096]{0}', space=vmem, size = 0x1000, scoped, tag = 'output window, operand 0, single buffered']
    #allocation3 [shape = 's32[1]{0}', space=sflag, size = 0x4, scoped, tag = 'scoped memory for _flnsh_forward.1']
    %10 = vsyncpa [#allocation3], 0
    // Predicated region
    $region2: #{_flnsh_forward.1} parent=1 // pred_check
      _
    $region3: #{_flnsh_forward.1} parent=1 // pred_check_branch
      %12 = sbr.rel (0) target = $region5
    $region4: #{_flnsh_forward.1} parent=1 // pred_region
      _
    $region5: #{_flnsh_forward.1} parent=1 // pred_fallthru
      _
    // Predicated region
    $region6: #{_flnsh_forward.1} parent=1 // pred_check
      _
    $region7: #{_flnsh_forward.1} parent=1 // pred_check_branch
      %14 = sbr.rel (0) target = $region9
    $region8: #{_flnsh_forward.1} parent=1 // pred_region
      _
    $region9: #{_flnsh_forward.1} parent=1 // pred_fallthru
      _
    // Predicated region
    $region10: #{_flnsh_forward.1} parent=1 // pred_check
      _
    $region11: #{_flnsh_forward.1} parent=1 // pred_check_branch
      %16 = sbr.rel (0) target = $region13
    $region12: #{_flnsh_forward.1} parent=1 // pred_region
      _
    $region13: #{_flnsh_forward.1} parent=1 // pred_fallthru
      _
    // Predicated region
    $region14: #{_flnsh_forward.1} parent=1 // pred_check
      _
    $region15: #{_flnsh_forward.1} parent=1 // pred_check_branch
      %18 = sbr.rel (0) target = $region17
    $region16: #{_flnsh_forward.1} parent=1 // pred_region
      _
    $region17: #{_flnsh_forward.1} parent=1 // pred_fallthru
      _
    // Predicated region
    $region18: #{_flnsh_forward.1} parent=1 // pred_check
      _
    $region19: #{_flnsh_forward.1} parent=1 // pred_check_branch
      %20 = sbr.rel (0) target = $region21
    $region20: #{_flnsh_forward.1} parent=1 // pred_region
      _
    $region21: #{_flnsh_forward.1} parent=1 // pred_fallthru
      _
    %v21 = vld [vmem:[%s0] sm:$0xff]
    %v22 = vld [vmem:[%s1] sm:$0xff]
    %v23 = vld [vmem:[%s1 + $0x8] sm:$0xff]
    %v24 = vld [vmem:[%s1 + $0x10] sm:$0xff]
    %v25 = vld [vmem:[%s2] sm:$0x1]
    %v27 = vlaneseq
    %v28 = vshrl.u32 %v27, 7
    %v29 = vsub.s32 0, %v28
    %v30 = vrot.slane %v25, %v29
    %vm32 = vcmask 195584
    %v34 = vsel %vm32, %v21, 0
    %36 = vmatprep.subr.mxu0 0.0
    %37 = vmatpush1.msra.mxu0 %v22
    %38 = vmatprep.subr.mxu0 0.0
    %39 = vmatpush1.msra.mxu0 %v23
    %40 = vmatprep.subr.mxu0 0.0
    %41 = vmatpush1.msra.mxu0 %v24
    %42 = vmatprep.subr.mxu0 0.0
    %43 = vmatpush1.msra.mxu0 0.0
    %44 = vmatprep.subr.mxu0 0.0
    %45 = vmatpush1.msra.mxu0 0.0
    %46 = vmatprep.subr.mxu0 0.0
    %47 = vmatpush1.msra.mxu0 0.0
    %48 = vmatprep.subr.mxu0 0.0
    %49 = vmatpush1.msra.mxu0 0.0
    %50 = vmatprep.subr.mxu0 0.0
    %51 = vmatpush1.msra.mxu0 0.0
    %52 = vmatprep.subr.mxu0 0.0
    %53 = vmatpush1.msra.mxu0 0.0
    %54 = vmatprep.subr.mxu0 0.0
    %55 = vmatpush1.msra.mxu0 0.0
    %56 = vmatprep.subr.mxu0 0.0
    %57 = vmatpush1.msra.mxu0 0.0
    %58 = vmatprep.subr.mxu0 0.0
    %59 = vmatpush1.msra.mxu0 0.0
    %60 = vmatprep.subr.mxu0 0.0
    %61 = vmatpush1.msra.mxu0 0.0
    %62 = vmatprep.subr.mxu0 0.0
    %63 = vmatpush1.msra.mxu0 0.0
    %64 = vmatprep.subr.mxu0 0.0
    %65 = vmatpush1.msra.mxu0 0.0
    %66 = vmatprep.subr.mxu0 0.0
    %67 = vmatpush1.msra.mxu0 0.0
    %68 = vmatprep.subr.mxu0 0.0
    %69 = vmatpush1.msra.mxu0 0.0
    %70 = vmatprep.subr.mxu0 0.0
    %71 = vmatpush1.msra.mxu0 0.0
    %72 = vmatprep.subr.mxu0 0.0
    %73 = vmatpush1.msra.mxu0 0.0
    %74 = vmatprep.subr.mxu0 0.0
    %75 = vmatpush1.msra.mxu0 0.0
    %76 = vmatprep.subr.mxu0 0.0
    %77 = vmatpush1.msra.mxu0 0.0
    %78 = vmatprep.subr.mxu0 0.0
    %79 = vmatpush1.msra.mxu0 0.0
    %80 = vmatprep.subr.mxu0 0.0
    %81 = vmatpush1.msra.mxu0 0.0
    %82 = vmatprep.subr.mxu0 0.0
    %83 = vmatpush1.msra.mxu0 0.0
    %84 = vmatprep.subr.mxu0 0.0
    %85 = vmatpush1.msra.mxu0 0.0
    %86 = vmatprep.subr.mxu0 0.0
    %87 = vmatpush1.msra.mxu0 0.0
    %88 = vmatprep.subr.mxu0 0.0
    %89 = vmatpush1.msra.mxu0 0.0
    %90 = vmatprep.subr.mxu0 0.0
    %91 = vmatpush1.msra.mxu0 0.0
    %92 = vmatprep.subr.mxu0 0.0
    %93 = vmatpush1.msra.mxu0 0.0
    %94 = vmatprep.subr.mxu0 0.0
    %95 = vmatpush1.msra.mxu0 0.0
    %96 = vmatprep.subr.mxu0 0.0
    %97 = vmatpush1.msra.mxu0 0.0
    %98 = vmatprep.subr.mxu0 0.0
    %99 = vmatpush1.msra.mxu0 0.0
    %100 = vmatprep.mubr.f32.mxu0 0.0
    %101 = vmatmul.mubr.f32.gmra.mrb[0].mxu0 %v34
    %v102 = vpop.f32.mrb[0].mxu0
    %v103 = vadd.f32 %v30, %v102
    %v104 = vpop.f32.mrb[0].mxu0
    %105 = vdwg.mxu0
    %v106 = vmax.f32 %v103, 0.0
    %v107 = vld [vmem:[%s3] sm:$0xff]
    %v108 = vld [vmem:[%s3 + $0x8] sm:$0xff]
    %v109 = vld [vmem:[%s3 + $0x10] sm:$0xff]
    %v110 = vld [vmem:[%s3 + $0x18] sm:$0xff]
    %v111 = vld [vmem:[%s3 + $0x20] sm:$0xff]
    %v112 = vld [vmem:[%s4] sm:$0x1]
    %v114 = vlaneseq
    %v115 = vshrl.u32 %v114, 7
    %v116 = vsub.s32 0, %v115
    %v117 = vrot.slane %v112, %v116
    %vm119 = vcmask 326656
    %v121 = vsel %vm119, %v106, 0
    %123 = vmatprep.subr.mxu0 0.0
    %124 = vmatpush1.msra.mxu0 %v107
    %125 = vmatprep.subr.mxu0 0.0
    %126 = vmatpush1.msra.mxu0 %v108
    %127 = vmatprep.subr.mxu0 0.0
    %128 = vmatpush1.msra.mxu0 %v109
    %129 = vmatprep.subr.mxu0 0.0
    %130 = vmatpush1.msra.mxu0 %v110
    %131 = vmatprep.subr.mxu0 0.0
    %132 = vmatpush1.msra.mxu0 %v111
    %133 = vmatprep.subr.mxu0 0.0
    %134 = vmatpush1.msra.mxu0 0.0
    %135 = vmatprep.subr.mxu0 0.0
    %136 = vmatpush1.msra.mxu0 0.0
    %137 = vmatprep.subr.mxu0 0.0
    %138 = vmatpush1.msra.mxu0 0.0
    %139 = vmatprep.subr.mxu0 0.0
    %140 = vmatpush1.msra.mxu0 0.0
    %141 = vmatprep.subr.mxu0 0.0
    %142 = vmatpush1.msra.mxu0 0.0
    %143 = vmatprep.subr.mxu0 0.0
    %144 = vmatpush1.msra.mxu0 0.0
    %145 = vmatprep.subr.mxu0 0.0
    %146 = vmatpush1.msra.mxu0 0.0
    %147 = vmatprep.subr.mxu0 0.0
    %148 = vmatpush1.msra.mxu0 0.0
    %149 = vmatprep.subr.mxu0 0.0
    %150 = vmatpush1.msra.mxu0 0.0
    %151 = vmatprep.subr.mxu0 0.0
    %152 = vmatpush1.msra.mxu0 0.0
    %153 = vmatprep.subr.mxu0 0.0
    %154 = vmatpush1.msra.mxu0 0.0
    %155 = vmatprep.subr.mxu0 0.0
    %156 = vmatpush1.msra.mxu0 0.0
    %157 = vmatprep.subr.mxu0 0.0
    %158 = vmatpush1.msra.mxu0 0.0
    %159 = vmatprep.subr.mxu0 0.0
    %160 = vmatpush1.msra.mxu0 0.0
    %161 = vmatprep.subr.mxu0 0.0
    %162 = vmatpush1.msra.mxu0 0.0
    %163 = vmatprep.subr.mxu0 0.0
    %164 = vmatpush1.msra.mxu0 0.0
    %165 = vmatprep.subr.mxu0 0.0
    %166 = vmatpush1.msra.mxu0 0.0
    %167 = vmatprep.subr.mxu0 0.0
    %168 = vmatpush1.msra.mxu0 0.0
    %169 = vmatprep.subr.mxu0 0.0
    %170 = vmatpush1.msra.mxu0 0.0
    %171 = vmatprep.subr.mxu0 0.0
    %172 = vmatpush1.msra.mxu0 0.0
    %173 = vmatprep.subr.mxu0 0.0
    %174 = vmatpush1.msra.mxu0 0.0
    %175 = vmatprep.subr.mxu0 0.0
    %176 = vmatpush1.msra.mxu0 0.0
    %177 = vmatprep.subr.mxu0 0.0
    %178 = vmatpush1.msra.mxu0 0.0
    %179 = vmatprep.subr.mxu0 0.0
    %180 = vmatpush1.msra.mxu0 0.0
    %181 = vmatprep.subr.mxu0 0.0
    %182 = vmatpush1.msra.mxu0 0.0
    %183 = vmatprep.subr.mxu0 0.0
    %184 = vmatpush1.msra.mxu0 0.0
    %185 = vmatprep.subr.mxu0 0.0
    %186 = vmatpush1.msra.mxu0 0.0
    %187 = vmatprep.mubr.f32.mxu0 0.0
    %188 = vmatmul.mubr.f32.gmra.mrb[0].mxu0 %v121
    %v189 = vpop.f32.mrb[0].mxu0
    %v190 = vadd.f32 %v117, %v189
    %v191 = vpop.f32.mrb[0].mxu0
    %192 = vdwg.mxu0
    %vm193 = vcmask 39936
    %v194 = vsel %vm193, %v190, -inf
    %195 = vmax.xlane.f32.xlu0 %v194
    %v196 = vpop.xlane.xlu0 %195
    %v197 = vsub.f32 %v190, %v196
    %v198 = vmul.f32 %v197, 1.442695
    %v199 = vpow.pop %v198
    %v200 = vsel %vm193, %v199, 0.0
    %201 = vadd.xlane.f32.xlu0 %v200
    %v202 = vpop.xlane.xlu0 %201
    %v203 = vrcp.pop %v202
    %v204 = vmul.f32 %v199, %v203
    %205 = vst.msk [vmem:[#allocation2] sm:$0xff] %vm193, %v204
    // Predicated region
    $region22: #{_flnsh_forward.1} parent=1 // pred_check
      _
    $region23: #{_flnsh_forward.1} parent=1 // pred_check_branch
      %207 = sbr.rel (0) target = $region25
    $region24: #{_flnsh_forward.1} parent=1 // pred_region
      %s209 = ssub.s32 128, 128
      %210 = vsyncadd [#allocation3], %s209
      %s212 = sshll.u32 [#allocation2], 4
      %s213 = int_to_ptr.vmem [resolvable:$true] %s212
      %215 = dma.vmem_to_hbm [thread:$0]  %s213, 128, %s5, [#allocation3]
    $region25: #{_flnsh_forward.1} parent=1 // pred_fallthru
      _
    // Predicated region
    $region26: #{_flnsh_forward.1} parent=1 // pred_check
      _
    $region27: #{_flnsh_forward.1} parent=1 // pred_check_branch
      %217 = sbr.rel (0) target = $region29
    $region28: #{_flnsh_forward.1} parent=1 // pred_region
      %218 = dma.done [#allocation3], 128
    $region29: #{_flnsh_forward.1} parent=1 // pred_fallthru
      _
    %219 = vsyncpa [#allocation3], 1

</llo_original>
